<compile_context>
chip_gen: v6e
topology: v6e:2x2x1
jax: 0.10.0
libtpu: 0.0.40
codegen_flags: <defaults>
</compile_context>

<pallas_src>
import jax
import jax.numpy as jnp
import numpy as np
from jax.experimental import pallas as pl
from jax.experimental.pallas import tpu as pltpu  # noqa: F401  (TPU backend)

# Problem sizes (small, consistent with the module's forward).
B, Cin, H, W = 2, 4, 16, 16
Cout, K = 32, 3            # 3x3 conv, padding=1 ("same")
KKC = K * K * Cin          # 36: im2col contraction depth


def conv_relu_gap_kernel(p_ref, w_ref, b_ref, o_ref):
    """Single-invocation kernel (no grid; data trivially fits VMEM).

    p_ref: (B*H*W, KKC)   im2col patches, columns ordered (kh, kw, cin)
    w_ref: (KKC, Cout)    conv weights flattened to match the patch columns
    b_ref: (1, Cout)      conv bias
    o_ref: (B, Cout)      globally-average-pooled features
    """
    # One MXU matmul with contraction depth KKC=36 (replaces 9 depth-4 matmuls).
    y = jnp.dot(p_ref[...], w_ref[...], preferred_element_type=jnp.float32)
    y = jnp.maximum(y + b_ref[...], 0.0)             # bias + ReLU, f32 VPU
    # AdaptiveAvgPool2d((1,1)) == mean over the H*W spatial rows per batch.
    o_ref[...] = jnp.mean(y.reshape(B, H * W, Cout), axis=1)


@jax.jit
def feature_extractor(x_nchw, w_hwio, bias):
    """x_nchw: (B, Cin, H, W) -> (B, Cout, 1, 1), matching the PyTorch module."""
    # Layout glue (fused by XLA into one producer fusion): NCHW -> NHWC,
    # zero-pad for "same" conv, and im2col so the kernel is a single matmul.
    x_nhwc = jnp.transpose(x_nchw, (0, 2, 3, 1))                 # (B, H, W, Cin)
    x_pad = jnp.pad(x_nhwc, ((0, 0), (1, 1), (1, 1), (0, 0)))    # (B, H+2, W+2, Cin)
    taps = [x_pad[:, kh:kh + H, kw:kw + W, :]                    # each (B, H, W, Cin)
            for kh in range(K) for kw in range(K)]
    patches = jnp.concatenate(taps, axis=-1).reshape(B * H * W, KKC)
    w2d = w_hwio.reshape(KKC, Cout)   # rows ordered (kh, kw, cin): matches patches
    b2d = bias.reshape(1, Cout)

    pooled = pl.pallas_call(
        conv_relu_gap_kernel,
        out_shape=jax.ShapeDtypeStruct((B, Cout), jnp.float32),
        in_specs=[
            pl.BlockSpec((B * H * W, KKC), lambda: (0, 0)),
            pl.BlockSpec((KKC, Cout), lambda: (0, 0)),
            pl.BlockSpec((1, Cout), lambda: (0, 0)),
        ],
        out_specs=pl.BlockSpec((B, Cout), lambda: (0, 0)),
    )(patches, w2d, b2d)

    return pooled.reshape(B, Cout, 1, 1)


def _reference(x_nchw, w_hwio, bias):
    """Pure-JAX reference of Conv3x3(same) -> ReLU -> GlobalAvgPool."""
    x_nhwc = jnp.transpose(x_nchw, (0, 2, 3, 1))
    y = jax.lax.conv_general_dilated(
        x_nhwc, w_hwio, window_strides=(1, 1), padding="SAME",
        dimension_numbers=("NHWC", "HWIO", "NHWC"))
    y = jnp.maximum(y + bias, 0.0)
    return jnp.mean(y, axis=(1, 2)).reshape(B, Cout, 1, 1)


if __name__ == "__main__":
    key = jax.random.PRNGKey(0)
    kx, kw, kb = jax.random.split(key, 3)
    x = jax.random.normal(kx, (B, Cin, H, W), jnp.float32)       # NCHW, like PyTorch
    w = jax.random.normal(kw, (K, K, Cin, Cout), jnp.float32) * 0.1
    b = jax.random.normal(kb, (Cout,), jnp.float32) * 0.1

    out = jax.block_until_ready(feature_extractor(x, w, b))
    ref = jax.block_until_ready(_reference(x, w, b))

    assert out.shape == (B, Cout, 1, 1)
    assert np.allclose(np.asarray(out), np.asarray(ref), rtol=1e-4, atol=1e-4)
    print("KERNEL_OK")
</pallas_src>

<mosaic_0001>
module attributes {stable_mosaic.version = 11 : i64} {
  func.func @conv_relu_gap_kernel(%arg0: memref<512x36xf32, #tpu.memory_space<vmem>>, %arg1: memref<36x32xf32, #tpu.memory_space<vmem>>, %arg2: memref<1x32xf32, #tpu.memory_space<vmem>>, %arg3: memref<2x32xf32, #tpu.memory_space<vmem>>) attributes {dimension_semantics = [], scalar_prefetch = 0 : i64, scratch_operands = 0 : i64, tpu.core_type = #tpu.core_type<tc>} {
    %c0 = arith.constant 0 : index
    %c0_0 = arith.constant 0 : index
    %0 = vector.load %arg0[%c0, %c0_0] : memref<512x36xf32, #tpu.memory_space<vmem>>, vector<512x36xf32>
    %c0_1 = arith.constant 0 : index
    %c0_2 = arith.constant 0 : index
    %1 = vector.load %arg1[%c0_1, %c0_2] : memref<36x32xf32, #tpu.memory_space<vmem>>, vector<36x32xf32>
    %cst = arith.constant dense<0.000000e+00> : vector<512x32xf32>
    %2 = tpu.matmul %0, %1, %cst {dimension_numbers = #tpu.dot_dimension_numbers<[1], [0], [0], [1], [0, 0, 1, 1], [], []>} : vector<512x36xf32>, vector<36x32xf32>, vector<512x32xf32> -> vector<512x32xf32>
    %c0_3 = arith.constant 0 : index
    %c0_4 = arith.constant 0 : index
    %3 = vector.load %arg2[%c0_3, %c0_4] : memref<1x32xf32, #tpu.memory_space<vmem>>, vector<1x32xf32>
    %4 = vector.broadcast %3 : vector<1x32xf32> to vector<512x32xf32>
    %5 = arith.addf %2, %4 : vector<512x32xf32>
    %cst_5 = arith.constant 0.000000e+00 : f32
    %6 = vector.broadcast %cst_5 : f32 to vector<512x32xf32>
    %7 = arith.maximumf %5, %6 : vector<512x32xf32>
    %8 = vector.shape_cast %7 : vector<512x32xf32> to vector<2x256x32xf32>
    %cst_6 = arith.constant dense<0.000000e+00> : vector<2x32xf32>
    %9 = vector.multi_reduction <add>, %8, %cst_6 [1] : vector<2x256x32xf32> to vector<2x32xf32>
    %cst_7 = arith.constant 2.560000e+02 : f32
    %10 = vector.broadcast %cst_7 : f32 to vector<2x32xf32>
    %11 = arith.divf %9, %10 : vector<2x32xf32>
    %c0_8 = arith.constant 0 : index
    %c0_9 = arith.constant 0 : index
    %12 = vector.load %arg3[%c0_8, %c0_9] : memref<2x32xf32, #tpu.memory_space<vmem>>, vector<2x32xf32>
    tpu.vector_store %arg3[%c0_8, %c0_9], %11 {strides = array<i32>} : memref<2x32xf32, #tpu.memory_space<vmem>>, vector<2x32xf32>,
    return
  }
}

</mosaic_0001>

<llo_original>
// kernel: feature_extractor.1
$region0: #{feature_extractor.1}
  #allocation0 [shape = 'u32[]', space=smem, size = 0x4, offset = 0x4, fixed_abs, tag = 'smem constant byte address 0x4 - core index']
  #allocation1 [shape = 'u32[144,128]{1,0:T(1,128)}', space=vmem, size = 0x12000, scoped, tag = 'internal scratch']
  %s0 = inlined_call_operand.vmem [shape: f32[512,36], index: 0, kind: input, shape index: {}]
  %s1 = inlined_call_operand.vmem [shape: f32[36,32], index: 1, kind: input, shape index: {}]
  %s2 = inlined_call_operand.vmem [shape: f32[1,32], index: 2, kind: input, shape index: {}]
  %s3 = inlined_call_operand.hbm [shape: f32[2,32], index: 3, kind: output, shape index: {}]
  %s4 = sld [smem:[#allocation0]]
  $region22: #{feature_extractor.1} parent=0
    _
  %s6 = ssub.s32 1, %s4
  %s7 = scalar_select 0, %s6, %s4
  $region1: #{feature_extractor.1} parent=0
    #allocation2 [shape = 'u8[1024]{0}', space=vmem, size = 0x400, scoped, tag = 'output window, operand 0, single buffered']
    #allocation3 [shape = 's32[1]{0}', space=sflag, size = 0x4, scoped, tag = 'scoped memory for feature_extractor.1']
    %8 = vsyncpa [#allocation3], 0
    // Predicated region
    $region2: #{feature_extractor.1} parent=1 // pred_check
      _
    $region3: #{feature_extractor.1} parent=1 // pred_check_branch
      %10 = sbr.rel (0) target = $region5
    $region4: #{feature_extractor.1} parent=1 // pred_region
      _
    $region5: #{feature_extractor.1} parent=1 // pred_fallthru
      _
    // Predicated region
    $region6: #{feature_extractor.1} parent=1 // pred_check
      _
    $region7: #{feature_extractor.1} parent=1 // pred_check_branch
      %12 = sbr.rel (0) target = $region9
    $region8: #{feature_extractor.1} parent=1 // pred_region
      _
    $region9: #{feature_extractor.1} parent=1 // pred_fallthru
      _
    // Predicated region
    $region10: #{feature_extractor.1} parent=1 // pred_check
      _
    $region11: #{feature_extractor.1} parent=1 // pred_check_branch
      %14 = sbr.rel (0) target = $region13
    $region12: #{feature_extractor.1} parent=1 // pred_region
      _
    $region13: #{feature_extractor.1} parent=1 // pred_fallthru
      _
    %v15 = vld [vmem:[%s0] sm:$0xff]
    %v16 = vld [vmem:[%s0 + $0x8] sm:$0xff]
    %v17 = vld [vmem:[%s0 + $0x10] sm:$0xff]
    %v18 = vld [vmem:[%s0 + $0x18] sm:$0xff]
    %v19 = vld [vmem:[%s0 + $0x20] sm:$0xff]
    %v20 = vld [vmem:[%s0 + $0x28] sm:$0xff]
    %v21 = vld [vmem:[%s0 + $0x30] sm:$0xff]
    %v22 = vld [vmem:[%s0 + $0x38] sm:$0xff]
    %v23 = vld [vmem:[%s0 + $0x40] sm:$0xff]
    %v24 = vld [vmem:[%s0 + $0x48] sm:$0xff]
    %v25 = vld [vmem:[%s0 + $0x50] sm:$0xff]
    %v26 = vld [vmem:[%s0 + $0x58] sm:$0xff]
    %v27 = vld [vmem:[%s0 + $0x60] sm:$0xff]
    %v28 = vld [vmem:[%s0 + $0x68] sm:$0xff]
    %v29 = vld [vmem:[%s0 + $0x70] sm:$0xff]
    %v30 = vld [vmem:[%s0 + $0x78] sm:$0xff]
    %v31 = vld [vmem:[%s0 + $0x80] sm:$0xff]
    %v32 = vld [vmem:[%s0 + $0x88] sm:$0xff]
    %v33 = vld [vmem:[%s0 + $0x90] sm:$0xff]
    %v34 = vld [vmem:[%s0 + $0x98] sm:$0xff]
    %v35 = vld [vmem:[%s0 + $0xa0] sm:$0xff]
    %v36 = vld [vmem:[%s0 + $0xa8] sm:$0xff]
    %v37 = vld [vmem:[%s0 + $0xb0] sm:$0xff]
    %v38 = vld [vmem:[%s0 + $0xb8] sm:$0xff]
    %v39 = vld [vmem:[%s0 + $0xc0] sm:$0xff]
    %v40 = vld [vmem:[%s0 + $0xc8] sm:$0xff]
    %v41 = vld [vmem:[%s0 + $0xd0] sm:$0xff]
    %v42 = vld [vmem:[%s0 + $0xd8] sm:$0xff]
    %v43 = vld [vmem:[%s0 + $0xe0] sm:$0xff]
    %v44 = vld [vmem:[%s0 + $0xe8] sm:$0xff]
    %v45 = vld [vmem:[%s0 + $0xf0] sm:$0xff]
    %v46 = vld [vmem:[%s0 + $0xf8] sm:$0xff]
    %v47 = vld [vmem:[%s0 + $0x100] sm:$0xff]
    %v48 = vld [vmem:[%s0 + $0x108] sm:$0xff]
    %v49 = vld [vmem:[%s0 + $0x110] sm:$0xff]
    %v50 = vld [vmem:[%s0 + $0x118] sm:$0xff]
    %v51 = vld [vmem:[%s0 + $0x120] sm:$0xff]
    %v52 = vld [vmem:[%s0 + $0x128] sm:$0xff]
    %v53 = vld [vmem:[%s0 + $0x130] sm:$0xff]
    %v54 = vld [vmem:[%s0 + $0x138] sm:$0xff]
    %v55 = vld [vmem:[%s0 + $0x140] sm:$0xff]
    %v56 = vld [vmem:[%s0 + $0x148] sm:$0xff]
    %v57 = vld [vmem:[%s0 + $0x150] sm:$0xff]
    %v58 = vld [vmem:[%s0 + $0x158] sm:$0xff]
    %v59 = vld [vmem:[%s0 + $0x160] sm:$0xff]
    %v60 = vld [vmem:[%s0 + $0x168] sm:$0xff]
    %v61 = vld [vmem:[%s0 + $0x170] sm:$0xff]
    %v62 = vld [vmem:[%s0 + $0x178] sm:$0xff]
    %v63 = vld [vmem:[%s0 + $0x180] sm:$0xff]
    %v64 = vld [vmem:[%s0 + $0x188] sm:$0xff]
    %v65 = vld [vmem:[%s0 + $0x190] sm:$0xff]
    %v66 = vld [vmem:[%s0 + $0x198] sm:$0xff]
    %v67 = vld [vmem:[%s0 + $0x1a0] sm:$0xff]
    %v68 = vld [vmem:[%s0 + $0x1a8] sm:$0xff]
    %v69 = vld [vmem:[%s0 + $0x1b0] sm:$0xff]
    %v70 = vld [vmem:[%s0 + $0x1b8] sm:$0xff]
    %v71 = vld [vmem:[%s0 + $0x1c0] sm:$0xff]
    %v72 = vld [vmem:[%s0 + $0x1c8] sm:$0xff]
    %v73 = vld [vmem:[%s0 + $0x1d0] sm:$0xff]
    %v74 = vld [vmem:[%s0 + $0x1d8] sm:$0xff]
    %v75 = vld [vmem:[%s0 + $0x1e0] sm:$0xff]
    %v76 = vld [vmem:[%s0 + $0x1e8] sm:$0xff]
    %v77 = vld [vmem:[%s0 + $0x1f0] sm:$0xff]
    %v78 = vld [vmem:[%s0 + $0x1f8] sm:$0xff]
    %v79 = vld [vmem:[%s1] sm:$0xff]
    %v80 = vld [vmem:[%s1 + $0x8] sm:$0xff]
    %v81 = vld [vmem:[%s1 + $0x10] sm:$0xff]
    %v82 = vld [vmem:[%s1 + $0x18] sm:$0xff]
    %v83 = vld [vmem:[%s1 + $0x20] sm:$0xf]
    %v84 = vld [vmem:[%s2] sm:$0x1]
    %v86 = vlaneseq
    %v87 = vshrl.u32 %v86, 7
    %v88 = vsub.s32 0, %v87
    %v89 = vrot.slane %v84, %v88
    %vm91 = vcmask 293888
    %v93 = vsel %vm91, %v15, 0
    %v96 = vsel %vm91, %v16, 0
    %v99 = vsel %vm91, %v17, 0
    %v102 = vsel %vm91, %v18, 0
    %v105 = vsel %vm91, %v19, 0
    %v108 = vsel %vm91, %v20, 0
    %v111 = vsel %vm91, %v21, 0
    %v114 = vsel %vm91, %v22, 0
    %v117 = vsel %vm91, %v23, 0
    %v120 = vsel %vm91, %v24, 0
    %v123 = vsel %vm91, %v25, 0
    %v126 = vsel %vm91, %v26, 0
    %v129 = vsel %vm91, %v27, 0
    %v132 = vsel %vm91, %v28, 0
    %v135 = vsel %vm91, %v29, 0
    %v138 = vsel %vm91, %v30, 0
    %v141 = vsel %vm91, %v31, 0
    %v144 = vsel %vm91, %v32, 0
    %v147 = vsel %vm91, %v33, 0
    %v150 = vsel %vm91, %v34, 0
    %v153 = vsel %vm91, %v35, 0
    %v156 = vsel %vm91, %v36, 0
    %v159 = vsel %vm91, %v37, 0
    %v162 = vsel %vm91, %v38, 0
    %v165 = vsel %vm91, %v39, 0
    %v168 = vsel %vm91, %v40, 0
    %v171 = vsel %vm91, %v41, 0
    %v174 = vsel %vm91, %v42, 0
    %v177 = vsel %vm91, %v43, 0
    %v180 = vsel %vm91, %v44, 0
    %v183 = vsel %vm91, %v45, 0
    %v186 = vsel %vm91, %v46, 0
    %v189 = vsel %vm91, %v47, 0
    %v192 = vsel %vm91, %v48, 0
    %v195 = vsel %vm91, %v49, 0
    %v198 = vsel %vm91, %v50, 0
    %v201 = vsel %vm91, %v51, 0
    %v204 = vsel %vm91, %v52, 0
    %v207 = vsel %vm91, %v53, 0
    %v210 = vsel %vm91, %v54, 0
    %v213 = vsel %vm91, %v55, 0
    %v216 = vsel %vm91, %v56, 0
    %v219 = vsel %vm91, %v57, 0
    %v222 = vsel %vm91, %v58, 0
    %v225 = vsel %vm91, %v59, 0
    %v228 = vsel %vm91, %v60, 0
    %v231 = vsel %vm91, %v61, 0
    %v234 = vsel %vm91, %v62, 0
    %v237 = vsel %vm91, %v63, 0
    %v240 = vsel %vm91, %v64, 0
    %v243 = vsel %vm91, %v65, 0
    %v246 = vsel %vm91, %v66, 0
    %v249 = vsel %vm91, %v67, 0
    %v252 = vsel %vm91, %v68, 0
    %v255 = vsel %vm91, %v69, 0
    %v258 = vsel %vm91, %v70, 0
    %v261 = vsel %vm91, %v71, 0
    %v264 = vsel %vm91, %v72, 0
    %v267 = vsel %vm91, %v73, 0
    %v270 = vsel %vm91, %v74, 0
    %v273 = vsel %vm91, %v75, 0
    %v276 = vsel %vm91, %v76, 0
    %v279 = vsel %vm91, %v77, 0
    %v282 = vsel %vm91, %v78, 0
    %vm284 = vcmask 1043456
    %v286 = vsel %vm284, %v83, 0
    %288 = vmatprep.subr.mxu0 0.0
    %289 = vmatpush1.msra.mxu0 0.0
    %290 = vmatprep.subr.mxu0 0.0
    %291 = vmatpush1.msra.mxu0 0.0
    %292 = vmatprep.subr.mxu0 0.0
    %293 = vmatpush1.msra.mxu0 0.0
    %294 = vmatprep.subr.mxu0 0.0
    %295 = vmatpush1.msra.mxu0 0.0
    %296 = vmatprep.subr.mxu0 0.0
    %297 = vmatpush1.msra.mxu0 0.0
    %298 = vmatprep.subr.mxu0 0.0
    %299 = vmatpush1.msra.mxu0 0.0
    %300 = vmatprep.subr.mxu0 0.0
    %301 = vmatpush1.msra.mxu0 0.0
    %302 = vmatprep.subr.mxu0 0.0
    %303 = vmatpush1.msra.mxu0 0.0
    %304 = vmatprep.subr.mxu0 0.0
    %305 = vmatpush1.msra.mxu0 0.0
    %306 = vmatprep.subr.mxu0 0.0
    %307 = vmatpush1.msra.mxu0 0.0
    %308 = vmatprep.subr.mxu0 0.0
    %309 = vmatpush1.msra.mxu0 0.0
    %310 = vmatprep.subr.mxu0 0.0
    %311 = vmatpush1.msra.mxu0 %v286
    %312 = vmatprep.subr.mxu0 0.0
    %313 = vmatpush1.msra.mxu0 %v82
    %314 = vmatprep.subr.mxu0 0.0
    %315 = vmatpush1.msra.mxu0 %v81
    %316 = vmatprep.subr.mxu0 0.0
    %317 = vmatpush1.msra.mxu0 %v80
    %318 = vmatprep.subr.mxu0 0.0
    %319 = vmatpush1.msra.mxu0 %v79
    %320 = vmatprep.subr.mxu0 0.0
    %321 = vmatpush2.msra.mxu0 0.0
    %322 = vmatprep.subr.mxu0 0.0
    %323 = vmatpush2.msra.mxu0 0.0
    %324 = vmatprep.subr.mxu0 0.0
    %325 = vmatpush2.msra.mxu0 0.0
    %326 = vmatprep.subr.mxu0 0.0
    %327 = vmatpush2.msra.mxu0 0.0
    %328 = vmatprep.subr.mxu0 0.0
    %329 = vmatpush2.msra.mxu0 0.0
    %330 = vmatprep.subr.mxu0 0.0
    %331 = vmatpush2.msra.mxu0 0.0
    %332 = vmatprep.subr.mxu0 0.0
    %333 = vmatpush2.msra.mxu0 0.0
    %334 = vmatprep.subr.mxu0 0.0
    %335 = vmatpush2.msra.mxu0 0.0
    %336 = vmatprep.subr.mxu0 0.0
    %337 = vmatpush2.msra.mxu0 0.0
    %338 = vmatprep.subr.mxu0 0.0
    %339 = vmatpush2.msra.mxu0 0.0
    %340 = vmatprep.subr.mxu0 0.0
    %341 = vmatpush2.msra.mxu0 0.0
    %342 = vmatprep.subr.mxu0 0.0
    %343 = vmatpush2.msra.mxu0 0.0
    %344 = vmatprep.subr.mxu0 0.0
    %345 = vmatpush2.msra.mxu0 0.0
    %346 = vmatprep.subr.mxu0 0.0
    %347 = vmatpush2.msra.mxu0 0.0
    %348 = vmatprep.subr.mxu0 0.0
    %349 = vmatpush2.msra.mxu0 0.0
    %350 = vmatprep.subr.mxu0 0.0
    %351 = vmatpush2.msra.mxu0 0.0
    %352 = vmatprep.mubr.f32.mxu0 0.0
    %353 = vmatmul.mubr.f32.gmra.mxu0 %v93
    %v354 = vpop.f32.mrf.mxu0
    %v355 = vadd.f32 %v89, %v354
    %v356 = vpop.f32.mrf.mxu0
    %357 = vmatprep.mubr.f32.mxu0 0.0
    %358 = vmatmul.mubr.f32.gmra.mxu0 %v96
    %v359 = vpop.f32.mrf.mxu0
    %v360 = vadd.f32 %v89, %v359
    %v361 = vpop.f32.mrf.mxu0
    %362 = vmatprep.mubr.f32.mxu0 0.0
    %363 = vmatmul.mubr.f32.gmra.mxu0 %v99
    %v364 = vpop.f32.mrf.mxu0
    %v365 = vadd.f32 %v89, %v364
    %v366 = vpop.f32.mrf.mxu0
    %367 = vmatprep.mubr.f32.mxu0 0.0
    %368 = vmatmul.mubr.f32.gmra.mxu0 %v102
    %v369 = vpop.f32.mrf.mxu0
    %v370 = vadd.f32 %v89, %v369
    %v371 = vpop.f32.mrf.mxu0
    %372 = vmatprep.mubr.f32.mxu0 0.0
    %373 = vmatmul.mubr.f32.gmra.mxu0 %v105
    %v374 = vpop.f32.mrf.mxu0
    %v375 = vadd.f32 %v89, %v374
    %v376 = vpop.f32.mrf.mxu0
    %377 = vmatprep.mubr.f32.mxu0 0.0
    %378 = vmatmul.mubr.f32.gmra.mxu0 %v108
    %v379 = vpop.f32.mrf.mxu0
    %v380 = vadd.f32 %v89, %v379
    %v381 = vpop.f32.mrf.mxu0
    %382 = vmatprep.mubr.f32.mxu0 0.0
    %383 = vmatmul.mubr.f32.gmra.mxu0 %v111
    %v384 = vpop.f32.mrf.mxu0
    %v385 = vadd.f32 %v89, %v384
    %v386 = vpop.f32.mrf.mxu0
    %387 = vmatprep.mubr.f32.mxu0 0.0
    %388 = vmatmul.mubr.f32.gmra.mxu0 %v114
    %v389 = vpop.f32.mrf.mxu0
    %v390 = vadd.f32 %v89, %v389
    %v391 = vpop.f32.mrf.mxu0
    %392 = vmatprep.mubr.f32.mxu0 0.0
    %393 = vmatmul.mubr.f32.gmra.mxu0 %v117
    %v394 = vpop.f32.mrf.mxu0
    %v395 = vadd.f32 %v89, %v394
    %v396 = vpop.f32.mrf.mxu0
    %397 = vmatprep.mubr.f32.mxu0 0.0
    %398 = vmatmul.mubr.f32.gmra.mxu0 %v120
    %v399 = vpop.f32.mrf.mxu0
    %v400 = vadd.f32 %v89, %v399
    %v401 = vpop.f32.mrf.mxu0
    %402 = vmatprep.mubr.f32.mxu0 0.0
    %403 = vmatmul.mubr.f32.gmra.mxu0 %v123
    %v404 = vpop.f32.mrf.mxu0
    %v405 = vadd.f32 %v89, %v404
    %v406 = vpop.f32.mrf.mxu0
    %407 = vmatprep.mubr.f32.mxu0 0.0
    %408 = vmatmul.mubr.f32.gmra.mxu0 %v126
    %v409 = vpop.f32.mrf.mxu0
    %v410 = vadd.f32 %v89, %v409
    %v411 = vpop.f32.mrf.mxu0
    %412 = vmatprep.mubr.f32.mxu0 0.0
    %413 = vmatmul.mubr.f32.gmra.mxu0 %v129
    %v414 = vpop.f32.mrf.mxu0
    %v415 = vadd.f32 %v89, %v414
    %v416 = vpop.f32.mrf.mxu0
    %417 = vmatprep.mubr.f32.mxu0 0.0
    %418 = vmatmul.mubr.f32.gmra.mxu0 %v132
    %v419 = vpop.f32.mrf.mxu0
    %v420 = vadd.f32 %v89, %v419
    %v421 = vpop.f32.mrf.mxu0
    %422 = vmatprep.mubr.f32.mxu0 0.0
    %423 = vmatmul.mubr.f32.gmra.mxu0 %v135
    %v424 = vpop.f32.mrf.mxu0
    %v425 = vadd.f32 %v89, %v424
    %v426 = vpop.f32.mrf.mxu0
    %427 = vmatprep.mubr.f32.mxu0 0.0
    %428 = vmatmul.mubr.f32.gmra.mxu0 %v138
    %v429 = vpop.f32.mrf.mxu0
    %v430 = vadd.f32 %v89, %v429
    %v431 = vpop.f32.mrf.mxu0
    %432 = vmatprep.mubr.f32.mxu0 0.0
    %433 = vmatmul.mubr.f32.gmra.mxu0 %v141
    %v434 = vpop.f32.mrf.mxu0
    %v435 = vadd.f32 %v89, %v434
    %v436 = vpop.f32.mrf.mxu0
    %437 = vmatprep.mubr.f32.mxu0 0.0
    %438 = vmatmul.mubr.f32.gmra.mxu0 %v144
    %v439 = vpop.f32.mrf.mxu0
    %v440 = vadd.f32 %v89, %v439
    %v441 = vpop.f32.mrf.mxu0
    %442 = vmatprep.mubr.f32.mxu0 0.0
    %443 = vmatmul.mubr.f32.gmra.mxu0 %v147
    %v444 = vpop.f32.mrf.mxu0
    %v445 = vadd.f32 %v89, %v444
    %v446 = vpop.f32.mrf.mxu0
    %447 = vmatprep.mubr.f32.mxu0 0.0
    %448 = vmatmul.mubr.f32.gmra.mxu0 %v150
    %v449 = vpop.f32.mrf.mxu0
    %v450 = vadd.f32 %v89, %v449
    %v451 = vpop.f32.mrf.mxu0
    %452 = vmatprep.mubr.f32.mxu0 0.0
    %453 = vmatmul.mubr.f32.gmra.mxu0 %v153
    %v454 = vpop.f32.mrf.mxu0
    %v455 = vadd.f32 %v89, %v454
    %v456 = vpop.f32.mrf.mxu0
    %457 = vmatprep.mubr.f32.mxu0 0.0
    %458 = vmatmul.mubr.f32.gmra.mxu0 %v156
    %v459 = vpop.f32.mrf.mxu0
    %v460 = vadd.f32 %v89, %v459
    %v461 = vpop.f32.mrf.mxu0
    %462 = vmatprep.mubr.f32.mxu0 0.0
    %463 = vmatmul.mubr.f32.gmra.mxu0 %v159
    %v464 = vpop.f32.mrf.mxu0
    %v465 = vadd.f32 %v89, %v464
    %v466 = vpop.f32.mrf.mxu0
    %467 = vmatprep.mubr.f32.mxu0 0.0
    %468 = vmatmul.mubr.f32.gmra.mxu0 %v162
    %v469 = vpop.f32.mrf.mxu0
    %v470 = vadd.f32 %v89, %v469
    %v471 = vpop.f32.mrf.mxu0
    %472 = vmatprep.mubr.f32.mxu0 0.0
    %473 = vmatmul.mubr.f32.gmra.mxu0 %v165
    %v474 = vpop.f32.mrf.mxu0
    %v475 = vadd.f32 %v89, %v474
    %v476 = vpop.f32.mrf.mxu0
    %477 = vmatprep.mubr.f32.mxu0 0.0
    %478 = vmatmul.mubr.f32.gmra.mxu0 %v168
    %v479 = vpop.f32.mrf.mxu0
    %v480 = vadd.f32 %v89, %v479
    %v481 = vpop.f32.mrf.mxu0
    %482 = vmatprep.mubr.f32.mxu0 0.0
    %483 = vmatmul.mubr.f32.gmra.mxu0 %v171
    %v484 = vpop.f32.mrf.mxu0
    %v485 = vadd.f32 %v89, %v484
    %v486 = vpop.f32.mrf.mxu0
    %487 = vmatprep.mubr.f32.mxu0 0.0
    %488 = vmatmul.mubr.f32.gmra.mxu0 %v174
    %v489 = vpop.f32.mrf.mxu0
    %v490 = vadd.f32 %v89, %v489
    %v491 = vpop.f32.mrf.mxu0
    %492 = vmatprep.mubr.f32.mxu0 0.0
    %493 = vmatmul.mubr.f32.gmra.mxu0 %v177
    %v494 = vpop.f32.mrf.mxu0
    %v495 = vadd.f32 %v89, %v494
    %v496 = vpop.f32.mrf.mxu0
    %497 = vmatprep.mubr.f32.mxu0 0.0
    %498 = vmatmul.mubr.f32.gmra.mxu0 %v180
    %v499 = vpop.f32.mrf.mxu0
    %v500 = vadd.f32 %v89, %v499
    %v501 = vpop.f32.mrf.mxu0
    %502 = vmatprep.mubr.f32.mxu0 0.0
    %503 = vmatmul.mubr.f32.gmra.mxu0 %v183
    %v504 = vpop.f32.mrf.mxu0
    %v505 = vadd.f32 %v89, %v504
    %v506 = vpop.f32.mrf.mxu0
    %507 = vmatprep.mubr.f32.mxu0 0.0
    %508 = vmatmul.mubr.f32.gmra.mxu0 %v186
    %v509 = vpop.f32.mrf.mxu0
    %v510 = vadd.f32 %v89, %v509
    %v511 = vpop.f32.mrf.mxu0
    %512 = vmatprep.mubr.f32.mxu0 0.0
    %513 = vmatmul.mubr.f32.gmra.mxu0 %v189
    %v514 = vpop.f32.mrf.mxu0
    %v515 = vadd.f32 %v89, %v514
    %v516 = vpop.f32.mrf.mxu0
    %517 = vmatprep.mubr.f32.mxu0 0.0
    %518 = vmatmul.mubr.f32.gmra.mxu0 %v192
    %v519 = vpop.f32.mrf.mxu0
    %v520 = vadd.f32 %v89, %v519
    %v521 = vpop.f32.mrf.mxu0
    %522 = vmatprep.mubr.f32.mxu0 0.0
    %523 = vmatmul.mubr.f32.gmra.mxu0 %v195
    %v524 = vpop.f32.mrf.mxu0
    %v525 = vadd.f32 %v89, %v524
    %v526 = vpop.f32.mrf.mxu0
    %527 = vmatprep.mubr.f32.mxu0 0.0
    %528 = vmatmul.mubr.f32.gmra.mxu0 %v198
    %v529 = vpop.f32.mrf.mxu0
    %v530 = vadd.f32 %v89, %v529
    %v531 = vpop.f32.mrf.mxu0
    %532 = vmatprep.mubr.f32.mxu0 0.0
    %533 = vmatmul.mubr.f32.gmra.mxu0 %v201
    %v534 = vpop.f32.mrf.mxu0
    %v535 = vadd.f32 %v89, %v534
    %v536 = vpop.f32.mrf.mxu0
    %537 = vmatprep.mubr.f32.mxu0 0.0
    %538 = vmatmul.mubr.f32.gmra.mxu0 %v204
    %v539 = vpop.f32.mrf.mxu0
    %v540 = vadd.f32 %v89, %v539
    %v541 = vpop.f32.mrf.mxu0
    %542 = vmatprep.mubr.f32.mxu0 0.0
    %543 = vmatmul.mubr.f32.gmra.mxu0 %v207
    %v544 = vpop.f32.mrf.mxu0
    %v545 = vadd.f32 %v89, %v544
    %v546 = vpop.f32.mrf.mxu0
    %547 = vmatprep.mubr.f32.mxu0 0.0
    %548 = vmatmul.mubr.f32.gmra.mxu0 %v210
    %v549 = vpop.f32.mrf.mxu0
    %v550 = vadd.f32 %v89, %v549
    %v551 = vpop.f32.mrf.mxu0
    %552 = vmatprep.mubr.f32.mxu0 0.0
    %553 = vmatmul.mubr.f32.gmra.mxu0 %v213
    %v554 = vpop.f32.mrf.mxu0
    %v555 = vadd.f32 %v89, %v554
    %v556 = vpop.f32.mrf.mxu0
    %557 = vmatprep.mubr.f32.mxu0 0.0
    %558 = vmatmul.mubr.f32.gmra.mxu0 %v216
    %v559 = vpop.f32.mrf.mxu0
    %v560 = vadd.f32 %v89, %v559
    %v561 = vpop.f32.mrf.mxu0
    %562 = vmatprep.mubr.f32.mxu0 0.0
    %563 = vmatmul.mubr.f32.gmra.mxu0 %v219
    %v564 = vpop.f32.mrf.mxu0
    %v565 = vadd.f32 %v89, %v564
    %v566 = vpop.f32.mrf.mxu0
    %567 = vmatprep.mubr.f32.mxu0 0.0
    %568 = vmatmul.mubr.f32.gmra.mxu0 %v222
    %v569 = vpop.f32.mrf.mxu0
    %v570 = vadd.f32 %v89, %v569
    %v571 = vpop.f32.mrf.mxu0
    %572 = vmatprep.mubr.f32.mxu0 0.0
    %573 = vmatmul.mubr.f32.gmra.mxu0 %v225
    %v574 = vpop.f32.mrf.mxu0
    %v575 = vadd.f32 %v89, %v574
    %v576 = vpop.f32.mrf.mxu0
    %577 = vmatprep.mubr.f32.mxu0 0.0
    %578 = vmatmul.mubr.f32.gmra.mxu0 %v228
    %v579 = vpop.f32.mrf.mxu0
    %v580 = vadd.f32 %v89, %v579
    %v581 = vpop.f32.mrf.mxu0
    %582 = vmatprep.mubr.f32.mxu0 0.0
    %583 = vmatmul.mubr.f32.gmra.mxu0 %v231
    %v584 = vpop.f32.mrf.mxu0
    %v585 = vadd.f32 %v89, %v584
    %v586 = vpop.f32.mrf.mxu0
    %587 = vmatprep.mubr.f32.mxu0 0.0
    %588 = vmatmul.mubr.f32.gmra.mxu0 %v234
    %v589 = vpop.f32.mrf.mxu0
    %v590 = vadd.f32 %v89, %v589
    %v591 = vpop.f32.mrf.mxu0
    %592 = vmatprep.mubr.f32.mxu0 0.0
    %593 = vmatmul.mubr.f32.gmra.mxu0 %v237
    %v594 = vpop.f32.mrf.mxu0
    %v595 = vadd.f32 %v89, %v594
    %v596 = vpop.f32.mrf.mxu0
    %597 = vmatprep.mubr.f32.mxu0 0.0
    %598 = vmatmul.mubr.f32.gmra.mxu0 %v240
    %v599 = vpop.f32.mrf.mxu0
    %v600 = vadd.f32 %v89, %v599
    %v601 = vpop.f32.mrf.mxu0
    %602 = vmatprep.mubr.f32.mxu0 0.0
    %603 = vmatmul.mubr.f32.gmra.mxu0 %v243
    %v604 = vpop.f32.mrf.mxu0
    %v605 = vadd.f32 %v89, %v604
    %v606 = vpop.f32.mrf.mxu0
    %607 = vmatprep.mubr.f32.mxu0 0.0
    %608 = vmatmul.mubr.f32.gmra.mxu0 %v246
    %v609 = vpop.f32.mrf.mxu0
    %v610 = vadd.f32 %v89, %v609
    %v611 = vpop.f32.mrf.mxu0
    %612 = vmatprep.mubr.f32.mxu0 0.0
    %613 = vmatmul.mubr.f32.gmra.mxu0 %v249
    %v614 = vpop.f32.mrf.mxu0
    %v615 = vadd.f32 %v89, %v614
    %v616 = vpop.f32.mrf.mxu0
    %617 = vmatprep.mubr.f32.mxu0 0.0
    %618 = vmatmul.mubr.f32.gmra.mxu0 %v252
    %v619 = vpop.f32.mrf.mxu0
    %v620 = vadd.f32 %v89, %v619
    %v621 = vpop.f32.mrf.mxu0
    %622 = vmatprep.mubr.f32.mxu0 0.0
    %623 = vmatmul.mubr.f32.gmra.mxu0 %v255
    %v624 = vpop.f32.mrf.mxu0
    %v625 = vadd.f32 %v89, %v624
    %v626 = vpop.f32.mrf.mxu0
    %627 = vmatprep.mubr.f32.mxu0 0.0
    %628 = vmatmul.mubr.f32.gmra.mxu0 %v258
    %v629 = vpop.f32.mrf.mxu0
    %v630 = vadd.f32 %v89, %v629
    %v631 = vpop.f32.mrf.mxu0
    %632 = vmatprep.mubr.f32.mxu0 0.0
    %633 = vmatmul.mubr.f32.gmra.mxu0 %v261
    %v634 = vpop.f32.mrf.mxu0
    %v635 = vadd.f32 %v89, %v634
    %v636 = vpop.f32.mrf.mxu0
    %637 = vmatprep.mubr.f32.mxu0 0.0
    %638 = vmatmul.mubr.f32.gmra.mxu0 %v264
    %v639 = vpop.f32.mrf.mxu0
    %v640 = vadd.f32 %v89, %v639
    %v641 = vpop.f32.mrf.mxu0
    %642 = vmatprep.mubr.f32.mxu0 0.0
    %643 = vmatmul.mubr.f32.gmra.mxu0 %v267
    %v644 = vpop.f32.mrf.mxu0
    %v645 = vadd.f32 %v89, %v644
    %v646 = vpop.f32.mrf.mxu0
    %647 = vmatprep.mubr.f32.mxu0 0.0
    %648 = vmatmul.mubr.f32.gmra.mxu0 %v270
    %v649 = vpop.f32.mrf.mxu0
    %v650 = vadd.f32 %v89, %v649
    %v651 = vpop.f32.mrf.mxu0
    %652 = vmatprep.mubr.f32.mxu0 0.0
    %653 = vmatmul.mubr.f32.gmra.mxu0 %v273
    %v654 = vpop.f32.mrf.mxu0
    %v655 = vadd.f32 %v89, %v654
    %v656 = vpop.f32.mrf.mxu0
    %657 = vmatprep.mubr.f32.mxu0 0.0
    %658 = vmatmul.mubr.f32.gmra.mxu0 %v276
    %v659 = vpop.f32.mrf.mxu0
    %v660 = vadd.f32 %v89, %v659
    %v661 = vpop.f32.mrf.mxu0
    %662 = vmatprep.mubr.f32.mxu0 0.0
    %663 = vmatmul.mubr.f32.gmra.mxu0 %v279
    %v664 = vpop.f32.mrf.mxu0
    %v665 = vadd.f32 %v89, %v664
    %v666 = vpop.f32.mrf.mxu0
    %667 = vmatprep.mubr.f32.mxu0 0.0
    %668 = vmatmul.mubr.f32.gmra.mxu0 %v282
    %v669 = vpop.f32.mrf.mxu0
    %v670 = vadd.f32 %v89, %v669
    %v671 = vpop.f32.mrf.mxu0
    %672 = vdwg.mxu0
    %v673 = vmax.f32 %v355, 0.0
    %v674 = vmax.f32 %v360, 0.0
    %v675 = vmax.f32 %v365, 0.0
    %v676 = vmax.f32 %v370, 0.0
    %v677 = vmax.f32 %v375, 0.0
    %v678 = vmax.f32 %v380, 0.0
    %v679 = vmax.f32 %v385, 0.0
    %v680 = vmax.f32 %v390, 0.0
    %v681 = vmax.f32 %v395, 0.0
    %v682 = vmax.f32 %v400, 0.0
    %v683 = vmax.f32 %v405, 0.0
    %v684 = vmax.f32 %v410, 0.0
    %v685 = vmax.f32 %v415, 0.0
    %v686 = vmax.f32 %v420, 0.0
    %v687 = vmax.f32 %v425, 0.0
    %v688 = vmax.f32 %v430, 0.0
    %v689 = vmax.f32 %v435, 0.0
    %v690 = vmax.f32 %v440, 0.0
    %v691 = vmax.f32 %v445, 0.0
    %v692 = vmax.f32 %v450, 0.0
    %v693 = vmax.f32 %v455, 0.0
    %v694 = vmax.f32 %v460, 0.0
    %v695 = vmax.f32 %v465, 0.0
    %v696 = vmax.f32 %v470, 0.0
    %v697 = vmax.f32 %v475, 0.0
    %v698 = vmax.f32 %v480, 0.0
    %v699 = vmax.f32 %v485, 0.0
    %v700 = vmax.f32 %v490, 0.0
    %v701 = vmax.f32 %v495, 0.0
    %v702 = vmax.f32 %v500, 0.0
    %v703 = vmax.f32 %v505, 0.0
    %v704 = vmax.f32 %v510, 0.0
    %v705 = vmax.f32 %v515, 0.0
    %v706 = vmax.f32 %v520, 0.0
    %v707 = vmax.f32 %v525, 0.0
    %v708 = vmax.f32 %v530, 0.0
    %v709 = vmax.f32 %v535, 0.0
    %v710 = vmax.f32 %v540, 0.0
    %v711 = vmax.f32 %v545, 0.0
    %v712 = vmax.f32 %v550, 0.0
    %v713 = vmax.f32 %v555, 0.0
    %v714 = vmax.f32 %v560, 0.0
    %v715 = vmax.f32 %v565, 0.0
    %v716 = vmax.f32 %v570, 0.0
    %v717 = vmax.f32 %v575, 0.0
    %v718 = vmax.f32 %v580, 0.0
    %v719 = vmax.f32 %v585, 0.0
    %v720 = vmax.f32 %v590, 0.0
    %v721 = vmax.f32 %v595, 0.0
    %v722 = vmax.f32 %v600, 0.0
    %v723 = vmax.f32 %v605, 0.0
    %v724 = vmax.f32 %v610, 0.0
    %v725 = vmax.f32 %v615, 0.0
    %v726 = vmax.f32 %v620, 0.0
    %v727 = vmax.f32 %v625, 0.0
    %v728 = vmax.f32 %v630, 0.0
    %v729 = vmax.f32 %v635, 0.0
    %v730 = vmax.f32 %v640, 0.0
    %v731 = vmax.f32 %v645, 0.0
    %v732 = vmax.f32 %v650, 0.0
    %v733 = vmax.f32 %v655, 0.0
    %v734 = vmax.f32 %v660, 0.0
    %v735 = vmax.f32 %v665, 0.0
    %v736 = vmax.f32 %v670, 0.0
    %vm737 = vcmask 261120
    %v738 = vsel %vm737, %v673, 0.0
    %v739 = vsel %vm737, %v674, 0.0
    %v740 = vadd.f32 %v738, %v739
    %v741 = vsel %vm737, %v675, 0.0
    %v742 = vadd.f32 %v740, %v741
    %v743 = vsel %vm737, %v676, 0.0
    %v744 = vadd.f32 %v742, %v743
    %v745 = vsel %vm737, %v677, 0.0
    %v746 = vadd.f32 %v744, %v745
    %v747 = vsel %vm737, %v678, 0.0
    %v748 = vadd.f32 %v746, %v747
    %v749 = vsel %vm737, %v679, 0.0
    %v750 = vadd.f32 %v748, %v749
    %v751 = vsel %vm737, %v680, 0.0
    %v752 = vadd.f32 %v750, %v751
    %v753 = vsel %vm737, %v681, 0.0
    %v754 = vadd.f32 %v752, %v753
    %v755 = vsel %vm737, %v682, 0.0
    %v756 = vadd.f32 %v754, %v755
    %v757 = vsel %vm737, %v683, 0.0
    %v758 = vadd.f32 %v756, %v757
    %v759 = vsel %vm737, %v684, 0.0
    %v760 = vadd.f32 %v758, %v759
    %v761 = vsel %vm737, %v685, 0.0
    %v762 = vadd.f32 %v760, %v761
    %v763 = vsel %vm737, %v686, 0.0
    %v764 = vadd.f32 %v762, %v763
    %v765 = vsel %vm737, %v687, 0.0
    %v766 = vadd.f32 %v764, %v765
    %v767 = vsel %vm737, %v688, 0.0
    %v768 = vadd.f32 %v766, %v767
    %v769 = vsel %vm737, %v689, 0.0
    %v770 = vadd.f32 %v768, %v769
    %v771 = vsel %vm737, %v690, 0.0
    %v772 = vadd.f32 %v770, %v771
    %v773 = vsel %vm737, %v691, 0.0
    %v774 = vadd.f32 %v772, %v773
    %v775 = vsel %vm737, %v692, 0.0
    %v776 = vadd.f32 %v774, %v775
    %v777 = vsel %vm737, %v693, 0.0
    %v778 = vadd.f32 %v776, %v777
    %v779 = vsel %vm737, %v694, 0.0
    %v780 = vadd.f32 %v778, %v779
    %v781 = vsel %vm737, %v695, 0.0
    %v782 = vadd.f32 %v780, %v781
    %v783 = vsel %vm737, %v696, 0.0
    %v784 = vadd.f32 %v782, %v783
    %v785 = vsel %vm737, %v697, 0.0
    %v786 = vadd.f32 %v784, %v785
    %v787 = vsel %vm737, %v698, 0.0
    %v788 = vadd.f32 %v786, %v787
    %v789 = vsel %vm737, %v699, 0.0
    %v790 = vadd.f32 %v788, %v789
    %v791 = vsel %vm737, %v700, 0.0
    %v792 = vadd.f32 %v790, %v791
    %v793 = vsel %vm737, %v701, 0.0
    %v794 = vadd.f32 %v792, %v793
    %v795 = vsel %vm737, %v702, 0.0
    %v796 = vadd.f32 %v794, %v795
    %v797 = vsel %vm737, %v703, 0.0
    %v798 = vadd.f32 %v796, %v797
    %v799 = vsel %vm737, %v704, 0.0
    %v800 = vadd.f32 %v798, %v799
    %v801 = vrot.slane %v800, 4
    %v802 = vadd.f32 %v800, %v801
    %v803 = vrot.slane %v802, 2
    %v804 = vadd.f32 %v802, %v803
    %v805 = vrot.slane %v804, 1
    %v806 = vadd.f32 %v804, %v805
    %v807 = vsel %vm737, %v705, 0.0
    %v808 = vsel %vm737, %v706, 0.0
    %v809 = vadd.f32 %v807, %v808
    %v810 = vsel %vm737, %v707, 0.0
    %v811 = vadd.f32 %v809, %v810
    %v812 = vsel %vm737, %v708, 0.0
    %v813 = vadd.f32 %v811, %v812
    %v814 = vsel %vm737, %v709, 0.0
    %v815 = vadd.f32 %v813, %v814
    %v816 = vsel %vm737, %v710, 0.0
    %v817 = vadd.f32 %v815, %v816
    %v818 = vsel %vm737, %v711, 0.0
    %v819 = vadd.f32 %v817, %v818
    %v820 = vsel %vm737, %v712, 0.0
    %v821 = vadd.f32 %v819, %v820
    %v822 = vsel %vm737, %v713, 0.0
    %v823 = vadd.f32 %v821, %v822
    %v824 = vsel %vm737, %v714, 0.0
    %v825 = vadd.f32 %v823, %v824
    %v826 = vsel %vm737, %v715, 0.0
    %v827 = vadd.f32 %v825, %v826
    %v828 = vsel %vm737, %v716, 0.0
    %v829 = vadd.f32 %v827, %v828
    %v830 = vsel %vm737, %v717, 0.0
    %v831 = vadd.f32 %v829, %v830
    %v832 = vsel %vm737, %v718, 0.0
    %v833 = vadd.f32 %v831, %v832
    %v834 = vsel %vm737, %v719, 0.0
    %v835 = vadd.f32 %v833, %v834
    %v836 = vsel %vm737, %v720, 0.0
    %v837 = vadd.f32 %v835, %v836
    %v838 = vsel %vm737, %v721, 0.0
    %v839 = vadd.f32 %v837, %v838
    %v840 = vsel %vm737, %v722, 0.0
    %v841 = vadd.f32 %v839, %v840
    %v842 = vsel %vm737, %v723, 0.0
    %v843 = vadd.f32 %v841, %v842
    %v844 = vsel %vm737, %v724, 0.0
    %v845 = vadd.f32 %v843, %v844
    %v846 = vsel %vm737, %v725, 0.0
    %v847 = vadd.f32 %v845, %v846
    %v848 = vsel %vm737, %v726, 0.0
    %v849 = vadd.f32 %v847, %v848
    %v850 = vsel %vm737, %v727, 0.0
    %v851 = vadd.f32 %v849, %v850
    %v852 = vsel %vm737, %v728, 0.0
    %v853 = vadd.f32 %v851, %v852
    %v854 = vsel %vm737, %v729, 0.0
    %v855 = vadd.f32 %v853, %v854
    %v856 = vsel %vm737, %v730, 0.0
    %v857 = vadd.f32 %v855, %v856
    %v858 = vsel %vm737, %v731, 0.0
    %v859 = vadd.f32 %v857, %v858
    %v860 = vsel %vm737, %v732, 0.0
    %v861 = vadd.f32 %v859, %v860
    %v862 = vsel %vm737, %v733, 0.0
    %v863 = vadd.f32 %v861, %v862
    %v864 = vsel %vm737, %v734, 0.0
    %v865 = vadd.f32 %v863, %v864
    %v866 = vsel %vm737, %v735, 0.0
    %v867 = vadd.f32 %v865, %v866
    %v868 = vsel %vm737, %v736, 0.0
    %v869 = vadd.f32 %v867, %v868
    %v870 = vrot.slane %v869, 4
    %v871 = vadd.f32 %v869, %v870
    %v872 = vrot.slane %v871, 2
    %v873 = vadd.f32 %v871, %v872
    %v874 = vrot.slane %v873, 1
    %v875 = vadd.f32 %v873, %v874
    %v876 = vrcp.pop 256.0
    %v877 = vmul.f32 %v806, %v876
    %v878 = vmul.f32 %v875, %v876
    %vm881 = vcmask 1041409
    %v882 = vsel %vm881, %v878, %v877
    %vm884 = vcmask 254976
    %885 = vst.msk [vmem:[#allocation2] sm:$0x3] %vm884, %v882
    // Predicated region
    $region14: #{feature_extractor.1} parent=1 // pred_check
      _
    $region15: #{feature_extractor.1} parent=1 // pred_check_branch
      %887 = sbr.rel (0) target = $region17
    $region16: #{feature_extractor.1} parent=1 // pred_region
      %s889 = ssub.s32 32, 32
      %890 = vsyncadd [#allocation3], %s889
      %s892 = sshll.u32 [#allocation2], 4
      %s893 = int_to_ptr.vmem [resolvable:$true] %s892
      %895 = dma.vmem_to_hbm [thread:$0]  %s893, 32, %s3, [#allocation3]
    $region17: #{feature_extractor.1} parent=1 // pred_fallthru
      _
    // Predicated region
    $region18: #{feature_extractor.1} parent=1 // pred_check
      _
    $region19: #{feature_extractor.1} parent=1 // pred_check_branch
      %897 = sbr.rel (0) target = $region21
    $region20: #{feature_extractor.1} parent=1 // pred_region
      %898 = dma.done [#allocation3], 32
    $region21: #{feature_extractor.1} parent=1 // pred_fallthru
      _
    %899 = vsyncpa [#allocation3], 1

</llo_original>
